<compile_context>
chip_gen: v7x
topology: tpu7x:2x2x1
jax: 0.10.0
libtpu: 0.0.40
codegen_flags: <defaults>
</compile_context>

<pallas_src>
import functools

import jax
import jax.numpy as jnp
from jax.experimental import pallas as pl
from jax.experimental.pallas import tpu as pltpu


def _round_up(v, m):
    return -(-v // m) * m


def _conv_gemm_kernel(xc_ref, xn_ref, w_ref, b_ref, o_ref, *,
                      tap_offsets, tile_m, neg_slope):
    """One (batch, row-tile) grid step.

    xc_ref : (Cin, TM)  current tile of the flattened padded image   (bf16)
    xn_ref : (Cin, HB)  halo: first HB pixels of the next tile       (bf16)
    w_ref  : (Cout, K)  weights, K = KH*KW*Cin, tap-major/cin-fast   (bf16)
    b_ref  : (Cout, 1)  bias                                         (f32)
    o_ref  : (Cout, TM) lane-dense output tile                       (f32)
    """
    # In-kernel im2col: each tap of the KHxKW window is a constant lane shift
    # of the flat raster, so the (K, TM) LHS is built from static slices of
    # the [current | halo] window — no HBM im2col matrix, no dynamic indexing.
    window = jnp.concatenate([xc_ref[...], xn_ref[...]], axis=-1)   # (Cin, TM+HB)
    lhs_t = jnp.concatenate(
        [window[:, off:off + tile_m] for off in tap_offsets], axis=0)  # (K, TM)

    # Single MXU matmul (bf16 operands, f32 accumulation) + fused epilogue.
    acc = jnp.dot(w_ref[...], lhs_t, preferred_element_type=jnp.float32)
    acc = acc + b_ref[...]                                # (Cout,TM) + (Cout,1)
    y = jnp.where(acc >= 0, acc, neg_slope * acc)         # LeakyReLU, f32
    o_ref[...] = y.astype(o_ref.dtype)


def conv2d_leakyrelu(x_nchw, weight_oihw, bias, *, stride=1, pad=1,
                     neg_slope=0.01, tile_m=512, compute_dtype=jnp.bfloat16):
    """Forward pass of the module: LeakyReLU(Conv2d(x)).  NCHW in / NCHW out."""
    N, Cin, H, W = x_nchw.shape
    Cout, _, KH, KW = weight_oihw.shape
    if stride != 1:
        # TODO(synk): stride > 1 needs a phase-split raster; this model uses stride=1.
        raise NotImplementedError("Pallas conv kernel implements stride=1 only")

    Hp, Wp = H + 2 * pad, W + 2 * pad
    Hout, Wout = Hp - KH + 1, Wp - KW + 1
    K = KH * KW * Cin

    # Keep output pixels on a Wp-wide raster (KW-1 junk right-edge columns,
    # sliced off afterwards) so each tap is a constant lane shift.
    M = Hout * Wp                        # flat raster pixels per batch element
    halo = (KH - 1) * Wp + (KW - 1)      # pixels a tile needs past its own end

    # M tile: multiple of 128 lanes, as large as possible while keeping >= 4
    # grid steps (>= 2 per TensorCore on v7x megacore).
    TM = max(128, (min(tile_m, _round_up(M, 128)) // 128) * 128)
    while TM > 128 and N * (-(-M // TM)) < 4:
        TM -= 128
    assert halo <= TM, "conv window halo must fit within one extra tile"
    HB = min(TM, _round_up(halo, 128))   # halo lanes actually fetched
    nr = -(-M // TM)                     # row tiles per batch element

    # ---- wrapper-side layout plumbing (pure data movement, input read once) ----
    # NCHW -> spatial pad -> flat (N, Cin, Hp*Wp) -> row tiles (N, nr+1, Cin, TM)
    # (one extra zero row keeps the last tile's halo reads in bounds).
    x_pad = jnp.pad(x_nchw, ((0, 0), (0, 0), (pad, pad), (pad, pad)))
    x_flat = x_pad.reshape(N, Cin, Hp * Wp)
    L = (nr + 1) * TM
    x_flat = jnp.pad(x_flat, ((0, 0), (0, 0), (0, L - Hp * Wp)))
    x_tiles = x_flat.reshape(N, Cin, nr + 1, TM).transpose(0, 2, 1, 3)
    x_tiles = x_tiles.astype(compute_dtype)

    # OIHW -> (Cout, KH, KW, Cin) -> (Cout, K): tap-major, cin-fastest — matches
    # the LHS assembly order in the kernel.
    w2d = jnp.transpose(weight_oihw, (0, 2, 3, 1)).reshape(Cout, K).astype(compute_dtype)
    b2d = bias.reshape(Cout, 1).astype(jnp.float32)

    tap_offsets = tuple(kh * Wp + kw for kh in range(KH) for kw in range(KW))
    kernel = functools.partial(_conv_gemm_kernel, tap_offsets=tap_offsets,
                               tile_m=TM, neg_slope=neg_slope)

    out = pl.pallas_call(
        kernel,
        out_shape=jax.ShapeDtypeStruct((N, Cout, nr * TM), x_nchw.dtype),
        grid_spec=pltpu.PrefetchScalarGridSpec(
            num_scalar_prefetch=0,
            grid=(N, nr),
            in_specs=[
                # current row tile of the flat raster
                pl.BlockSpec((None, None, Cin, TM), lambda n, r: (n, r, 0, 0)),
                # halo: first HB lanes of the next row tile
                pl.BlockSpec((None, None, Cin, HB), lambda n, r: (n, r + 1, 0, 0)),
                # full (Cout, K) weights — resident across the grid
                pl.BlockSpec((Cout, K), lambda n, r: (0, 0)),
                # bias
                pl.BlockSpec((Cout, 1), lambda n, r: (0, 0)),
            ],
            out_specs=pl.BlockSpec((None, Cout, TM), lambda n, r: (n, 0, r)),
        ),
        compiler_params=pltpu.CompilerParams(
            dimension_semantics=("parallel", "parallel")),
    )(x_tiles, x_tiles, w2d, b2d)

    # Drop tile/raster padding: (N, Cout, nr*TM) -> NCHW (N, Cout, Hout, Wout).
    out = out[:, :, :M].reshape(N, Cout, Hout, Wp)[:, :, :, :Wout]
    return out


def init_conv_params(key, in_ch, out_ch, kernel):
    """Matches the module's _initialize_weights: kaiming_normal_(fan_out, relu)
    for the weight and PyTorch's default Conv2d bias init (+/- 1/sqrt(fan_in))."""
    w_key, b_key = jax.random.split(key)
    fan_out = out_ch * kernel * kernel
    fan_in = in_ch * kernel * kernel
    std = (2.0 / fan_out) ** 0.5
    weight = std * jax.random.normal(w_key, (out_ch, in_ch, kernel, kernel),
                                     dtype=jnp.float32)
    bound = 1.0 / (fan_in ** 0.5)
    bias = jax.random.uniform(b_key, (out_ch,), minval=-bound, maxval=bound,
                              dtype=jnp.float32)
    return weight, bias


if __name__ == "__main__":
    key = jax.random.PRNGKey(0)
    x_key, p_key = jax.random.split(key)

    # Small shapes consistent with the module's forward: NCHW input.
    N, Cin, H, W = 2, 4, 16, 16
    Cout, Kk, STRIDE, PAD = 8, 3, 1, 1

    x = jax.random.normal(x_key, (N, Cin, H, W), dtype=jnp.float32)
    weight, bias = init_conv_params(p_key, Cin, Cout, Kk)

    out = conv2d_leakyrelu(x, weight, bias, stride=STRIDE, pad=PAD)
    out = jax.block_until_ready(out)

    # Reference: XLA conv + bias + LeakyReLU (f32); kernel uses bf16 MXU
    # operands with f32 accumulation, so tolerance is loosened accordingly.
    ref = jax.lax.conv_general_dilated(
        x, weight, window_strides=(STRIDE, STRIDE),
        padding=((PAD, PAD), (PAD, PAD)),
        dimension_numbers=("NCHW", "OIHW", "NCHW"))
    ref = ref + bias.reshape(1, Cout, 1, 1)
    ref = jnp.where(ref >= 0, ref, 0.01 * ref)

    assert out.shape == (N, Cout, H, W)
    assert jnp.allclose(out, ref, atol=2e-2, rtol=2e-2)

    print("KERNEL_OK")
</pallas_src>

<mosaic_0001>
module attributes {stable_mosaic.version = 11 : i64} {
  func.func @_conv_gemm_kernel(%arg0: i32, %arg1: i32, %arg2: memref<1x1x4x256xbf16, #tpu.memory_space<vmem>>, %arg3: memref<1x1x4x128xbf16, #tpu.memory_space<vmem>>, %arg4: memref<8x36xbf16, #tpu.memory_space<vmem>>, %arg5: memref<8x1xf32, #tpu.memory_space<vmem>>, %arg6: memref<1x8x256xf32, #tpu.memory_space<vmem>>) attributes {dimension_semantics = [#tpu.dimension_semantics<parallel>, #tpu.dimension_semantics<parallel>], iteration_bounds = array<i64: 2, 2>, scalar_prefetch = 0 : i64, scratch_operands = 0 : i64, tpu.core_type = #tpu.core_type<tc>, window_params = [{transform_indices = @transform_0, window_bounds = array<i64: 1, 1, 4, 256>}, {transform_indices = @transform_1, window_bounds = array<i64: 1, 1, 4, 128>}, {pipeline_mode = #tpu.pipeline_mode<synchronous>, transform_indices = @transform_2, window_bounds = array<i64: 8, 36>}, {pipeline_mode = #tpu.pipeline_mode<synchronous>, transform_indices = @transform_3, window_bounds = array<i64: 8, 1>}, {transform_indices = @transform_4, window_bounds = array<i64: 1, 8, 256>}]} {
    %c0 = arith.constant 0 : index
    %c0_0 = arith.constant 0 : index
    %c0_1 = arith.constant 0 : index
    %c0_2 = arith.constant 0 : index
    %0 = vector.load %arg2[%c0, %c0_0, %c0_1, %c0_2] : memref<1x1x4x256xbf16, #tpu.memory_space<vmem>>, vector<1x1x4x256xbf16>
    %1 = vector.shape_cast %0 : vector<1x1x4x256xbf16> to vector<4x256xbf16>
    %c0_3 = arith.constant 0 : index
    %c0_4 = arith.constant 0 : index
    %c0_5 = arith.constant 0 : index
    %c0_6 = arith.constant 0 : index
    %2 = vector.load %arg3[%c0_3, %c0_4, %c0_5, %c0_6] : memref<1x1x4x128xbf16, #tpu.memory_space<vmem>>, vector<1x1x4x128xbf16>
    %3 = vector.shape_cast %2 : vector<1x1x4x128xbf16> to vector<4x128xbf16>
    %4 = tpu.concatenate %1, %3 in 1 : vector<4x256xbf16>, vector<4x128xbf16> -> vector<4x384xbf16>
    %5 = vector.extract_strided_slice %4 {offsets = [0, 0], sizes = [4, 256], strides = [1, 1]} : vector<4x384xbf16> to vector<4x256xbf16>
    %6 = vector.extract_strided_slice %4 {offsets = [0, 1], sizes = [4, 256], strides = [1, 1]} : vector<4x384xbf16> to vector<4x256xbf16>
    %7 = vector.extract_strided_slice %4 {offsets = [0, 2], sizes = [4, 256], strides = [1, 1]} : vector<4x384xbf16> to vector<4x256xbf16>
    %8 = vector.extract_strided_slice %4 {offsets = [0, 18], sizes = [4, 256], strides = [1, 1]} : vector<4x384xbf16> to vector<4x256xbf16>
    %9 = vector.extract_strided_slice %4 {offsets = [0, 19], sizes = [4, 256], strides = [1, 1]} : vector<4x384xbf16> to vector<4x256xbf16>
    %10 = vector.extract_strided_slice %4 {offsets = [0, 20], sizes = [4, 256], strides = [1, 1]} : vector<4x384xbf16> to vector<4x256xbf16>
    %11 = vector.extract_strided_slice %4 {offsets = [0, 36], sizes = [4, 256], strides = [1, 1]} : vector<4x384xbf16> to vector<4x256xbf16>
    %12 = vector.extract_strided_slice %4 {offsets = [0, 37], sizes = [4, 256], strides = [1, 1]} : vector<4x384xbf16> to vector<4x256xbf16>
    %13 = vector.extract_strided_slice %4 {offsets = [0, 38], sizes = [4, 256], strides = [1, 1]} : vector<4x384xbf16> to vector<4x256xbf16>
    %14 = tpu.concatenate %5, %6, %7, %8, %9, %10, %11, %12, %13 in 0 : vector<4x256xbf16>, vector<4x256xbf16>, vector<4x256xbf16>, vector<4x256xbf16>, vector<4x256xbf16>, vector<4x256xbf16>, vector<4x256xbf16>, vector<4x256xbf16>, vector<4x256xbf16> -> vector<36x256xbf16>
    %c0_7 = arith.constant 0 : index
    %c0_8 = arith.constant 0 : index
    %15 = vector.load %arg4[%c0_7, %c0_8] : memref<8x36xbf16, #tpu.memory_space<vmem>>, vector<8x36xbf16>
    %cst = arith.constant dense<0.000000e+00> : vector<8x256xf32>
    %16 = tpu.matmul %15, %14, %cst {dimension_numbers = #tpu.dot_dimension_numbers<[1], [0], [0], [1], [0, 0, 1, 1], [], []>} : vector<8x36xbf16>, vector<36x256xbf16>, vector<8x256xf32> -> vector<8x256xf32>
    %c0_9 = arith.constant 0 : index
    %c0_10 = arith.constant 0 : index
    %17 = vector.load %arg5[%c0_9, %c0_10] : memref<8x1xf32, #tpu.memory_space<vmem>>, vector<8x1xf32>
    %18 = vector.broadcast %17 : vector<8x1xf32> to vector<8x256xf32>
    %19 = arith.addf %16, %18 : vector<8x256xf32>
    %cst_11 = arith.constant 0.000000e+00 : f32
    %20 = vector.broadcast %cst_11 : f32 to vector<8x256xf32>
    %21 = arith.cmpf oge, %19, %20 : vector<8x256xf32>
    %cst_12 = arith.constant 0.00999999977 : f32
    %22 = vector.broadcast %cst_12 : f32 to vector<8x256xf32>
    %23 = arith.mulf %22, %19 : vector<8x256xf32>
    %24 = arith.select %21, %19, %23 : vector<8x256xi1>, vector<8x256xf32>
    %c0_13 = arith.constant 0 : index
    %c0_14 = arith.constant 0 : index
    %c0_15 = arith.constant 0 : index
    %25 = vector.load %arg6[%c0_13, %c0_14, %c0_15] : memref<1x8x256xf32, #tpu.memory_space<vmem>>, vector<1x8x256xf32>
    %26 = vector.shape_cast %25 : vector<1x8x256xf32> to vector<8x256xf32>
    %27 = vector.shape_cast %24 : vector<8x256xf32> to vector<1x8x256xf32>
    tpu.vector_store %arg6[%c0_13, %c0_14, %c0_15], %27 {strides = array<i32>} : memref<1x8x256xf32, #tpu.memory_space<vmem>>, vector<1x8x256xf32>,
    return
  }
  func.func @transform_0(%arg0: i32, %arg1: i32) -> (i32, i32, i32, i32) {
    %c0_i32 = arith.constant 0 : i32
    %c0_i32_0 = arith.constant 0 : i32
    %c0_i32_1 = arith.constant 0 : i32
    return %arg0, %arg1, %c0_i32, %c0_i32_0 : i32, i32, i32, i32
  }
  func.func @transform_1(%arg0: i32, %arg1: i32) -> (i32, i32, i32, i32) {
    %c1_i32 = arith.constant 1 : i32
    %0 = arith.addi %arg1, %c1_i32 : i32
    %c0_i32 = arith.constant 0 : i32
    %c0_i32_0 = arith.constant 0 : i32
    %c0_i32_1 = arith.constant 0 : i32
    return %arg0, %0, %c0_i32, %c0_i32_0 : i32, i32, i32, i32
  }
  func.func @transform_2(%arg0: i32, %arg1: i32) -> (i32, i32) {
    %c0_i32 = arith.constant 0 : i32
    %c0_i32_0 = arith.constant 0 : i32
    %c0_i32_1 = arith.constant 0 : i32
    return %c0_i32, %c0_i32_0 : i32, i32
  }
  func.func @transform_3(%arg0: i32, %arg1: i32) -> (i32, i32) {
    %c0_i32 = arith.constant 0 : i32
    %c0_i32_0 = arith.constant 0 : i32
    %c0_i32_1 = arith.constant 0 : i32
    return %c0_i32, %c0_i32_0 : i32, i32
  }
  func.func @transform_4(%arg0: i32, %arg1: i32) -> (i32, i32, i32) {
    %c0_i32 = arith.constant 0 : i32
    %c0_i32_0 = arith.constant 0 : i32
    return %arg0, %c0_i32, %arg1 : i32, i32, i32
  }
}

</mosaic_0001>

<llo_original>
// kernel: tpu_custom_call.1
$region0: #{tpu_custom_call.1}
  #allocation0 [shape = 'u32[]', space=smem, size = 0x4, offset = 0x4, fixed_abs, tag = 'smem constant byte address 0x4 - core index']
  #allocation1 [shape = 'u32[144,128]{1,0:T(1,128)}', space=vmem, size = 0x12000, scoped, tag = 'internal scratch']
  %s0 = inlined_call_operand.hbm [shape: bf16[2,3,4,256], index: 0, kind: input, shape index: {}]
  %s1 = inlined_call_operand.hbm [shape: bf16[2,3,4,256], index: 1, kind: input, shape index: {}]
  %s2 = inlined_call_operand.vmem [shape: bf16[8,36], index: 2, kind: input, shape index: {}]
  %s3 = inlined_call_operand.vmem [shape: f32[8,1], index: 3, kind: input, shape index: {}]
  %s4 = inlined_call_operand.hbm [shape: f32[2,8,512], index: 4, kind: output, shape index: {}]
  %s5 = sld [smem:[#allocation0]]
  $region57: #{tpu_custom_call.1} parent=0
    _
  %s7 = ssub.s32 1, %s5
  %s8 = scalar_select 0, %s7, %s5
  $region1: #{tpu_custom_call.1} parent=0
    #allocation2 [shape = 'u8[4096]{0}', space=vmem, size = 0x1000, scoped, tag = 'input window, operand 0']
    #allocation3 [shape = 's32[2]{0}', space=sflag, size = 0x8, scoped, tag = 'scoped memory for tpu_custom_call.1']
    #allocation4 [shape = 's32[2]{0}', space=sflag, size = 0x8, scoped, tag = 'scoped memory for tpu_custom_call.1']
    #allocation5 [shape = 'u8[2048]{0}', space=vmem, size = 0x800, scoped, tag = 'input window, operand 1']
    #allocation6 [shape = 's32[2]{0}', space=sflag, size = 0x8, scoped, tag = 'scoped memory for tpu_custom_call.1']
    #allocation7 [shape = 'u8[16384]{0}', space=vmem, size = 0x4000, scoped, tag = 'output window, operand 0']
    %9 = vsyncpa [#allocation3], 0
    %s10 = scalar_lea.sflag [#allocation3], 1
    %11 = vsyncpa %s10, 0
    %12 = vsyncpa [#allocation6], 0
    %s13 = scalar_lea.sflag [#allocation6], 1
    %14 = vsyncpa %s13, 0
    %15 = vsyncpa [#allocation4], 0
    %s16 = scalar_lea.sflag [#allocation4], 1
    %17 = vsyncpa %s16, 0
    loop: start=0, step=1, limit=6
    $region2: #{tpu_custom_call.1} parent=1 // loop_pre_header
      _
    $region3: #{tpu_custom_call.1} parent=1 // loop_header
      %s19 = sphi 0, %s23
      %p20 = scmp.ge.s32.totalorder %s19, 6
      %s26 = sphi 0, %s38
      %s27 = sphi 0, %s34
      %s28 = sphi 0, %s26
      %s29 = sphi 0, %s27
      %s30 = sphi 0, %s28
      %s31 = sphi 0, %s29
      %s43 = sphi 0, %s45
      %s46 = sphi 0, %s43
      %s47 = sphi 0, %s46
      %s63 = sphi 0, %s47
      %s73 = sphi 0, %s75
      %s76 = sphi 0, %s73
      %s77 = sphi 0, %s76
      %s93 = sphi 0, %s77
      %s97 = sphi 0, %s97
      %s99 = sphi 0, %s97
      %s100 = sphi 0, %s99
      %s114 = sphi 0, %s100
      %s118 = sphi 0, %s118
      %s120 = sphi 0, %s118
      %s121 = sphi 0, %s120
      %s135 = sphi 0, %s121
      %s143 = sphi 0, %s145
      %s146 = sphi 0, %s143
      %s147 = sphi 0, %s146
      %s163 = sphi 0, %s147
    $region4: #{tpu_custom_call.1} parent=1 // loop_header_branch
      %22 = sbr.rel (%p20) target = $region8
    $region5: #{tpu_custom_call.1} parent=1 // loop_body
      %s24 = ssub.s32 %s19, 1
      %s25 = ssub.s32 %s19, 2
      %s32 = sadd.s32 1, %s27
      %p33 = scmp.ge.s32.totalorder %s32, 2
      %s34 = scalar_select %p33, 0, %s32
      %s35 = sadd.s32 1, %s26
      %s36 = scalar_select %p33, %s35, %s26
      %p37 = scmp.ge.s32.totalorder %s36, 2
      %s38 = scalar_select %p37, 0, %s36
      %s39 = ssub.s32 %s26, %s38
      %s40 = ssub.s32 %s27, %s34
      %s41 = sor.u32 %s39, %s40
      %p42 = scmp.eq.s32.totalorder %s41, 0
      %s44 = sadd.s32 %s43, 1
      %s45 = scalar_select %p42, %s43, %s44
      %p48 = pneg %p42
      %p49 = scmp.eq.s32.totalorder %s19, 3
      %p50 = por %p48, %p49
      %p51 = scmp.ne.s32.totalorder %s43, %s46
      %p52 = scmp.eq.s32.totalorder %s19, 0
      %p53 = por %p51, %p52
      %p54 = scmp.ne.s32.totalorder %s43, %s46
      %p55 = scmp.eq.s32.totalorder %s24, 3
      %p56 = por %p54, %p55
      %p57 = scmp.ne.s32.totalorder %s46, %s47
      %p58 = scmp.eq.s32.totalorder %s24, 0
      %p59 = por %p57, %p58
      %p60 = scmp.ne.s32.totalorder %s46, %s47
      %p61 = scmp.eq.s32.totalorder %s25, 3
      %p62 = por %p60, %p61
      %p64 = scmp.ne.s32.totalorder %s47, %s63
      %p65 = scmp.eq.s32.totalorder %s25, 0
      %p66 = por %p64, %p65
      %s67 = sadd.s32 %s27, 1
      %s68 = sadd.s32 %s34, 1
      %s69 = ssub.s32 %s26, %s38
      %s70 = ssub.s32 %s67, %s68
      %s71 = sor.u32 %s69, %s70
      %p72 = scmp.eq.s32.totalorder %s71, 0
      %s74 = sadd.s32 %s73, 1
      %s75 = scalar_select %p72, %s73, %s74
      %p78 = pneg %p72
      %p79 = scmp.eq.s32.totalorder %s19, 3
      %p80 = por %p78, %p79
      %p81 = scmp.ne.s32.totalorder %s73, %s76
      %p82 = scmp.eq.s32.totalorder %s19, 0
      %p83 = por %p81, %p82
      %p84 = scmp.ne.s32.totalorder %s73, %s76
      %p85 = scmp.eq.s32.totalorder %s24, 3
      %p86 = por %p84, %p85
      %p87 = scmp.ne.s32.totalorder %s76, %s77
      %p88 = scmp.eq.s32.totalorder %s24, 0
      %p89 = por %p87, %p88
      %p90 = scmp.ne.s32.totalorder %s76, %s77
      %p91 = scmp.eq.s32.totalorder %s25, 3
      %p92 = por %p90, %p91
      %p94 = scmp.ne.s32.totalorder %s77, %s93
      %p95 = scmp.eq.s32.totalorder %s25, 0
      %p96 = por %p94, %p95
      %s98 = sadd.s32 %s97, 1
      %p101 = scmp.eq.s32.totalorder %s19, 3
      %p102 = scmp.ne.s32.totalorder %s97, %s99
      %p103 = scmp.eq.s32.totalorder %s19, 0
      %p104 = por %p102, %p103
      %p105 = scmp.ne.s32.totalorder %s97, %s99
      %p106 = scmp.eq.s32.totalorder %s24, 3
      %p107 = por %p105, %p106
      %p108 = scmp.ne.s32.totalorder %s99, %s100
      %p109 = scmp.eq.s32.totalorder %s24, 0
      %p110 = por %p108, %p109
      %p111 = scmp.ne.s32.totalorder %s99, %s100
      %p112 = scmp.eq.s32.totalorder %s25, 3
      %p113 = por %p111, %p112
      %p115 = scmp.ne.s32.totalorder %s100, %s114
      %p116 = scmp.eq.s32.totalorder %s25, 0
      %p117 = por %p115, %p116
      %s119 = sadd.s32 %s118, 1
      %p122 = scmp.eq.s32.totalorder %s19, 3
      %p123 = scmp.ne.s32.totalorder %s118, %s120
      %p124 = scmp.eq.s32.totalorder %s19, 0
      %p125 = por %p123, %p124
      %p126 = scmp.ne.s32.totalorder %s118, %s120
      %p127 = scmp.eq.s32.totalorder %s24, 3
      %p128 = por %p126, %p127
      %p129 = scmp.ne.s32.totalorder %s120, %s121
      %p130 = scmp.eq.s32.totalorder %s24, 0
      %p131 = por %p129, %p130
      %p132 = scmp.ne.s32.totalorder %s120, %s121
      %p133 = scmp.eq.s32.totalorder %s25, 3
      %p134 = por %p132, %p133
      %p136 = scmp.ne.s32.totalorder %s121, %s135
      %p137 = scmp.eq.s32.totalorder %s25, 0
      %p138 = por %p136, %p137
      %s139 = ssub.s32 %s26, %s38
      %s140 = ssub.s32 %s27, %s34
      %s141 = sor.u32 %s139, %s140
      %p142 = scmp.eq.s32.totalorder %s141, 0
      %s144 = sadd.s32 %s143, 1
      %s145 = scalar_select %p142, %s143, %s144
      %p148 = pneg %p142
      %p149 = scmp.eq.s32.totalorder %s19, 3
      %p150 = por %p148, %p149
      %p151 = scmp.ne.s32.totalorder %s143, %s146
      %p152 = scmp.eq.s32.totalorder %s19, 0
      %p153 = por %p151, %p152
      %p154 = scmp.ne.s32.totalorder %s143, %s146
      %p155 = scmp.eq.s32.totalorder %s24, 3
      %p156 = por %p154, %p155
      %p157 = scmp.ne.s32.totalorder %s146, %s147
      %p158 = scmp.eq.s32.totalorder %s24, 0
      %p159 = por %p157, %p158
      %p160 = scmp.ne.s32.totalorder %s146, %s147
      %p161 = scmp.eq.s32.totalorder %s25, 3
      %p162 = por %p160, %p161
      %p164 = scmp.ne.s32.totalorder %s147, %s163
      %p165 = scmp.eq.s32.totalorder %s25, 0
      %p166 = por %p164, %p165
      %p167 = scmp.le.s32.totalorder 1, %s19
      %p168 = scmp.lt.s32.totalorder %s19, 5
      %p169 = pnand %p167, %p168
      %p170 = pneg %p169
      // Predicated region
      $region9: #{tpu_custom_call.1} parent=5 // pred_check
        _
      $region10: #{tpu_custom_call.1} parent=5 // pred_check_branch
        %172 = sbr.rel (%p169) target = $region12
      $region11: #{tpu_custom_call.1} parent=5 // pred_region
        %s173 = ssub.s32 %s19, 1
        // Predicated region
        $region13: #{tpu_custom_call.1} parent=11 // pred_check
          %p174 = pneg %p110
        $region14: #{tpu_custom_call.1} parent=11 // pred_check_branch
          %176 = sbr.rel (%p174) target = $region16
        $region15: #{tpu_custom_call.1} parent=11 // pred_region
          _
        $region16: #{tpu_custom_call.1} parent=11 // pred_fallthru
          _
        // Predicated region
        $region17: #{tpu_custom_call.1} parent=11 // pred_check
          %p177 = pneg %p131
        $region18: #{tpu_custom_call.1} parent=11 // pred_check_branch
          %179 = sbr.rel (%p177) target = $region20
        $region19: #{tpu_custom_call.1} parent=11 // pred_region
          _
        $region20: #{tpu_custom_call.1} parent=11 // pred_fallthru
          _
      $region12: #{tpu_custom_call.1} parent=5 // pred_fallthru
        _
      %p180 = scmp.lt.s32.totalorder %s19, 4
      // Predicated region
      $region21: #{tpu_custom_call.1} parent=5 // pred_check
        %p181 = pneg %p180
      $region22: #{tpu_custom_call.1} parent=5 // pred_check_branch
        %183 = sbr.rel (%p181) target = $region24
      $region23: #{tpu_custom_call.1} parent=5 // pred_region
        // Predicated region
        $region25: #{tpu_custom_call.1} parent=23 // pred_check
          %p184 = pneg %p53
        $region26: #{tpu_custom_call.1} parent=23 // pred_check_branch
          %186 = sbr.rel (%p184) target = $region28
        $region27: #{tpu_custom_call.1} parent=23 // pred_region
          %s187 = sand.u32 %s43, 1
          %s188 = scalar_lea.sflag [#allocation3], %s187
          %s189 = sand.u32 %s43, 1
          %s190 = smul.addr %s189, 4
          %s191 = scalar_lea.vmem [#allocation2], %s190
          %s193 = ssub.s32 64, 64
          %194 = vsyncadd %s188, %s193
          %s195 = smul.addr %s27, 2
          %s196 = smul.addr %s26, 6
          %s197 = sadd.s32 %s195, %s196
          %s198 = smul.addr %s197, 32
          %s199 = scalar_lea.hbm %s0, %s198
          %s201 = sshll.u32 %s191, 4
          %s202 = int_to_ptr.vmem [resolvable:$true] %s201
          %204 = dma.hbm_to_vmem [thread:$0]  %s199, 64, %s202, %s188
        $region28: #{tpu_custom_call.1} parent=23 // pred_fallthru
          _
        // Predicated region
        $region29: #{tpu_custom_call.1} parent=23 // pred_check
          %p205 = pneg %p83
        $region30: #{tpu_custom_call.1} parent=23 // pred_check_branch
          %207 = sbr.rel (%p205) target = $region32
        $region31: #{tpu_custom_call.1} parent=23 // pred_region
          %s208 = sand.u32 %s73, 1
          %s209 = scalar_lea.sflag [#allocation6], %s208
          %s210 = sand.u32 %s73, 1
          %s211 = smul.addr %s210, 2
          %s212 = scalar_lea.vmem [#allocation5], %s211
          %s213 = sadd.s32 %s27, 1
          %s215 = ssub.s32 32, 32
          %216 = vsyncadd %s209, %s215
          %s217 = smul.addr %s213, 2
          %s218 = smul.addr %s26, 6
          %s219 = sadd.s32 %s217, %s218
          %s220 = smul.addr %s219, 32
          %s221 = scalar_lea.hbm %s1, %s220
          %s223 = sshll.u32 %s212, 4
          %s224 = int_to_ptr.vmem [resolvable:$true] %s223
          %226 = dma.hbm_to_vmem [thread:$0]  %s221, 32, %s224, %s209
        $region32: #{tpu_custom_call.1} parent=23 // pred_fallthru
          _
      $region24: #{tpu_custom_call.1} parent=5 // pred_fallthru
        _
      %p227 = scmp.le.s32.totalorder 1, %s19
      %p228 = scmp.lt.s32.totalorder %s19, 5
      %p229 = pnand %p227, %p228
      %p230 = pneg %p229
      // Predicated region
      $region33: #{tpu_custom_call.1} parent=5 // pred_check
        _
      $region34: #{tpu_custom_call.1} parent=5 // pred_check_branch
        %232 = sbr.rel (%p229) target = $region36
      $region35: #{tpu_custom_call.1} parent=5 // pred_region
        %s233 = ssub.s32 %s19, 1
        %s234 = sand.u32 %s46, 1
        %s235 = scalar_lea.sflag [#allocation3], %s234
        %s236 = sand.u32 %s46, 1
        %s237 = smul.addr %s236, 4
        %s238 = scalar_lea.vmem [#allocation2], %s237
        // Predicated region
        $region37: #{tpu_custom_call.1} parent=35 // pred_check
          %p239 = pneg %p59
        $region38: #{tpu_custom_call.1} parent=35 // pred_check_branch
          %241 = sbr.rel (%p239) target = $region40
        $region39: #{tpu_custom_call.1} parent=35 // pred_region
          %242 = dma.done %s235, 64
        $region40: #{tpu_custom_call.1} parent=35 // pred_fallthru
          _
        %s243 = sand.u32 %s76, 1
        %s244 = scalar_lea.sflag [#allocation6], %s243
        %s245 = sand.u32 %s76, 1
        %s246 = smul.addr %s245, 2
        %s247 = scalar_lea.vmem [#allocation5], %s246
        // Predicated region
        $region41: #{tpu_custom_call.1} parent=35 // pred_check
          %p248 = pneg %p89
        $region42: #{tpu_custom_call.1} parent=35 // pred_check_branch
          %250 = sbr.rel (%p248) target = $region44
        $region43: #{tpu_custom_call.1} parent=35 // pred_region
          %251 = dma.done %s244, 32
        $region44: #{tpu_custom_call.1} parent=35 // pred_fallthru
          _
        %s252 = sand.u32 %s46, 1
        %s253 = scalar_lea.sflag [#allocation3], %s252
        %s254 = sand.u32 %s46, 1
        %s255 = smul.addr %s254, 4
        %s256 = scalar_lea.vmem [#allocation2], %s255
        %p257 = pneg %p59
        %p258 = pneg %p56
        %s259 = sand.u32 %s76, 1
        %s260 = scalar_lea.sflag [#allocation6], %s259
        %s261 = sand.u32 %s76, 1
        %s262 = smul.addr %s261, 2
        %s263 = scalar_lea.vmem [#allocation5], %s262
        %p264 = pneg %p89
        %p265 = pneg %p86
        %p266 = pneg %p110
        %p267 = pneg %p107
        %p268 = pneg %p131
        %p269 = pneg %p128
        %p270 = pneg %p159
        %p271 = pneg %p156
        %s272 = sand.u32 %s146, 1
        %s273 = scalar_lea.sflag [#allocation4], %s272
        %s274 = sand.u32 %s146, 1
        %s275 = smul.addr %s274, 16
        %s276 = scalar_lea.vmem [#allocation7], %s275
        %s277 = sadd.s32 %s29, 1
        %s278 = smul.u32 2, %s29
        %v280 = vld [vmem:[%s238] sm:$0xf]
        %v281 = vld [vmem:[%s247] sm:$0x3]
        %v284 = vunpack.c.l.s4 1983009808
        %v285 = vunpack.c.0.s8 %v284
        %v286 = vlaneseq
        %v287 = vshrl.u32 %v286, 7
        %v288 = vsub.s32 %v285, %v287
        %v289 = vrot.slane %v280, %v288
        %v290 = vcombine.high %v289, %v289
        %v292 = vrot.slane %v289, 6
        %v293 = vrot.slane %v290, 6
        %v294 = vrot.slane %v281, 6
        %295 = vrot.lane.b32.xlu0 %v292, 127
        %v296 = vpop.permute.xlu0 %295
        %297 = vrot.lane.b32.xlu0 %v293, 127
        %v298 = vpop.permute.xlu0 %297
        %299 = vrot.lane.b32.xlu0 %v294, 127
        %v300 = vpop.permute.xlu0 %299
        %vm301 = vcmask 1039360
        %v302 = vsel %vm301, %v296, %v298
        %v303 = vsel %vm301, %v298, %v300
        %v304 = vrot.slane %v289, 4
        %v305 = vrot.slane %v290, 4
        %v306 = vrot.slane %v281, 4
        %307 = vrot.lane.b32.xlu0 %v304, 126
        %v308 = vpop.permute.xlu0 %307
        %309 = vrot.lane.b32.xlu0 %v305, 126
        %v310 = vpop.permute.xlu0 %309
        %311 = vrot.lane.b32.xlu0 %v306, 126
        %v312 = vpop.permute.xlu0 %311
        %vm313 = vcmask 1031168
        %v314 = vsel %vm313, %v308, %v310
        %v315 = vsel %vm313, %v310, %v312
        %v316 = vrot.slane %v289, 2
        %v317 = vrot.slane %v290, 2
        %v318 = vrot.slane %v281, 2
        %319 = vrot.lane.b32.xlu0 %v316, 110
        %v320 = vpop.permute.xlu0 %319
        %321 = vrot.lane.b32.xlu0 %v317, 110
        %v322 = vpop.permute.xlu0 %321
        %323 = vrot.lane.b32.xlu0 %v318, 110
        %v324 = vpop.permute.xlu0 %323
        %vm325 = vcmask 900096
        %v326 = vsel %vm325, %v320, %v322
        %v327 = vsel %vm325, %v322, %v324
        %328 = vrot.lane.b32.xlu0 %v289, 109
        %v329 = vpop.permute.xlu0 %328
        %330 = vrot.lane.b32.xlu0 %v290, 109
        %v331 = vpop.permute.xlu0 %330
        %332 = vrot.lane.b32.xlu0 %v281, 109
        %v333 = vpop.permute.xlu0 %332
        %vm334 = vcmask 891904
        %v335 = vsel %vm334, %v329, %v331
        %v336 = vsel %vm334, %v331, %v333
        %337 = vrot.lane.b32.xlu0 %v292, 108
        %v338 = vpop.permute.xlu0 %337
        %339 = vrot.lane.b32.xlu0 %v293, 108
        %v340 = vpop.permute.xlu0 %339
        %341 = vrot.lane.b32.xlu0 %v294, 108
        %v342 = vpop.permute.xlu0 %341
        %vm343 = vcmask 883712
        %v344 = vsel %vm343, %v338, %v340
        %v345 = vsel %vm343, %v340, %v342
        %346 = vrot.lane.b32.xlu0 %v304, 92
        %v347 = vpop.permute.xlu0 %346
        %348 = vrot.lane.b32.xlu0 %v305, 92
        %v349 = vpop.permute.xlu0 %348
        %350 = vrot.lane.b32.xlu0 %v306, 92
        %v351 = vpop.permute.xlu0 %350
        %vm352 = vcmask 752640
        %v353 = vsel %vm352, %v347, %v349
        %v354 = vsel %vm352, %v349, %v351
        %355 = vrot.lane.b32.xlu0 %v316, 91
        %v356 = vpop.permute.xlu0 %355
        %357 = vrot.lane.b32.xlu0 %v317, 91
        %v358 = vpop.permute.xlu0 %357
        %359 = vrot.lane.b32.xlu0 %v318, 91
        %v360 = vpop.permute.xlu0 %359
        %vm361 = vcmask 744448
        %v362 = vsel %vm361, %v356, %v358
        %v363 = vsel %vm361, %v358, %v360
        %364 = vrot.lane.b32.xlu0 %v289, 90
        %v365 = vpop.permute.xlu0 %364
        %366 = vrot.lane.b32.xlu0 %v290, 90
        %v367 = vpop.permute.xlu0 %366
        %368 = vrot.lane.b32.xlu0 %v281, 90
        %v369 = vpop.permute.xlu0 %368
        %vm370 = vcmask 736256
        %v371 = vsel %vm370, %v365, %v367
        %v372 = vsel %vm370, %v367, %v369
        %vm373 = vcmask 1041408
        %v376 = vsel %vm373, %v289, %v302
        %v379 = vsel %vm373, %v290, %v303
        %vm380 = vcmask 1043456
        %v382 = vsel %vm380, %v376, %v314
        %v384 = vsel %vm380, %v379, %v315
        %vm385 = vcmask 1045504
        %v387 = vsel %vm385, %v382, %v326
        %v390 = vsel %vm385, %v384, %v327
        %v394 = vsel %vm373, %v335, %v344
        %v397 = vsel %vm373, %v336, %v345
        %v399 = vsel %vm380, %v394, %v353
        %v401 = vsel %vm380, %v397, %v354
        %v403 = vsel %vm385, %v399, %v362
        %v406 = vsel %vm385, %v401, %v363
        %v408 = vld [vmem:[%s2] sm:$0xf]
        %v409 = vld [vmem:[%s3] sm:$0xff]
        %411 = vset.pattern.permute.xlu0 0
        %412 = vperm.xlu0 %411, %v409
        %v413 = vpop.permute.xlu0 %412
        %vm415 = vcmask 293888
        %v417 = vsel %vm415, %v408, 0
        %v420 = vsel %vm373, %v371, 0
        %v423 = vsel %vm373, %v372, 0
        %425 = vmatprep.subr.bf16.mxu0 %v390
        %426 = vmatpush1.bf16.msra.mxu0 %v387
        %427 = vmatprep.subr.bf16.mxu0 %v406
        %428 = vmatpush1.bf16.msra.mxu0 %v403
        %429 = vmatprep.subr.bf16.mxu0 %v423
        %430 = vmatpush1.bf16.msra.mxu0 %v420
        %431 = vmatprep.subr.bf16.mxu0 0
        %432 = vmatpush1.bf16.msra.mxu0 0
        %433 = vmatprep.subr.bf16.mxu0 0
        %434 = vmatpush1.bf16.msra.mxu0 0
        %435 = vmatprep.subr.bf16.mxu0 0
        %436 = vmatpush1.bf16.msra.mxu0 0
        %437 = vmatprep.subr.bf16.mxu0 0
        %438 = vmatpush1.bf16.msra.mxu0 0
        %439 = vmatprep.subr.bf16.mxu0 0
        %440 = vmatpush1.bf16.msra.mxu0 0
        %441 = vmatprep.subr.bf16.mxu0 0
        %442 = vmatpush1.bf16.msra.mxu0 0
        %443 = vmatprep.subr.bf16.mxu0 0
        %444 = vmatpush1.bf16.msra.mxu0 0
        %445 = vmatprep.subr.bf16.mxu0 0
        %446 = vmatpush1.bf16.msra.mxu0 0
        %447 = vmatprep.subr.bf16.mxu0 0
        %448 = vmatpush1.bf16.msra.mxu0 0
        %449 = vmatprep.subr.bf16.mxu0 0
        %450 = vmatpush1.bf16.msra.mxu0 0
        %451 = vmatprep.subr.bf16.mxu0 0
        %452 = vmatpush1.bf16.msra.mxu0 0
        %453 = vmatprep.subr.bf16.mxu0 0
        %454 = vmatpush1.bf16.msra.mxu0 0
        %455 = vmatprep.subr.bf16.mxu0 0
        %456 = vmatpush1.bf16.msra.mxu0 0
        %457 = vmatprep.mubr.bf16.mxu0 0
        %458 = vmatmul.mubr.bf16.gmra.mrb[0].mxu0 %v417
        %v459 = vpop.f32.mrb[0].mxu0
        %v460 = vadd.f32 %v413, %v459
        %v461 = vpop.f32.mrb[0].mxu0
        %v462 = vadd.f32 %v413, %v461
        %v463 = vpop.f32.mrb[0].mxu0
        %v464 = vpop.f32.mrb[0].mxu0
        %465 = vdwg.mxu0
        %vm466 = vcmp.ge.f32.partialorder %v460, 0.0
        %vm467 = vcmp.ge.f32.partialorder %v462, 0.0
        %v468 = vmul.f32 %v460, 0.01
        %v469 = vmul.f32 %v462, 0.01
        %v470 = vsel %vm466, %v460, %v468
        %v471 = vsel %vm467, %v462, %v469
        %472 = vst [vmem:[%s276] sm:$0xff] %v470
        %473 = vst [vmem:[%s276 + $0x8] sm:$0xff] %v471
        %s474 = sand.u32 %s146, 1
        %s475 = scalar_lea.sflag [#allocation4], %s474
        %s476 = sand.u32 %s146, 1
        %s477 = smul.addr %s476, 16
        %s478 = scalar_lea.vmem [#allocation7], %s477
        // Predicated region
        $region45: #{tpu_custom_call.1} parent=35 // pred_check
          %p479 = pneg %p156
        $region46: #{tpu_custom_call.1} parent=35 // pred_check_branch
          %481 = sbr.rel (%p479) target = $region48
        $region47: #{tpu_custom_call.1} parent=35 // pred_region
          %s482 = smul.u32 2, %s29
          %s484 = ssub.s32 256, 256
          %485 = vsyncadd %s475, %s484
          %s486 = smul.addr %s28, 4
          %s487 = sadd.s32 %s482, %s486
          %s488 = smul.addr %s487, 128
          %s489 = scalar_lea.hbm %s4, %s488
          %s491 = sshll.u32 %s478, 4
          %s492 = int_to_ptr.vmem [resolvable:$true] %s491
          %494 = dma.vmem_to_hbm [thread:$0]  %s492, 256, %s489, %s475
        $region48: #{tpu_custom_call.1} parent=35 // pred_fallthru
          _
      $region36: #{tpu_custom_call.1} parent=5 // pred_fallthru
        _
      %p495 = scmp.le.s32.totalorder 2, %s19
      // Predicated region
      $region49: #{tpu_custom_call.1} parent=5 // pred_check
        %p496 = pneg %p495
      $region50: #{tpu_custom_call.1} parent=5 // pred_check_branch
        %498 = sbr.rel (%p496) target = $region52
      $region51: #{tpu_custom_call.1} parent=5 // pred_region
        %s499 = ssub.s32 %s19, 2
        // Predicated region
        $region53: #{tpu_custom_call.1} parent=51 // pred_check
          %p500 = pneg %p162
        $region54: #{tpu_custom_call.1} parent=51 // pred_check_branch
          %502 = sbr.rel (%p500) target = $region56
        $region55: #{tpu_custom_call.1} parent=51 // pred_region
          %s503 = sand.u32 %s147, 1
          %s504 = scalar_lea.sflag [#allocation4], %s503
          %s505 = sand.u32 %s147, 1
          %s506 = smul.addr %s505, 16
          %s507 = scalar_lea.vmem [#allocation7], %s506
          %508 = dma.done %s504, 256
        $region56: #{tpu_custom_call.1} parent=51 // pred_fallthru
          _
      $region52: #{tpu_custom_call.1} parent=5 // pred_fallthru
        _
    $region6: #{tpu_custom_call.1} parent=1 // loop_footer
      %s23 = sadd.s32 1, %s19
    $region7: #{tpu_custom_call.1} parent=1 // loop_footer_branch
      %18 = sbr.rel target = $region3
    $region8: #{tpu_custom_call.1} parent=1 // loop_exit
      _
    %509 = vsyncpa [#allocation3], 1
    %s510 = scalar_lea.sflag [#allocation3], 1
    %511 = vsyncpa %s510, 1
    %512 = vsyncpa [#allocation6], 1
    %s513 = scalar_lea.sflag [#allocation6], 1
    %514 = vsyncpa %s513, 1
    %515 = vsyncpa [#allocation4], 1
    %s516 = scalar_lea.sflag [#allocation4], 1
    %517 = vsyncpa %s516, 1

</llo_original>
